<compile_context>
chip_gen: v6e
topology: v6e:2x2x1
jax: 0.10.0
libtpu: 0.0.40
codegen_flags: <defaults>
</compile_context>

<pallas_src>
import functools
import math

import jax
import jax.numpy as jnp
from jax.experimental import pallas as pl
from jax.experimental.pallas import tpu as pltpu

# ----------------------------------------------------------------------------
# small config consistent with styleGenerator(target_im_size=16, latent_dim=64,
# feat_maps=1024, max_features=64) -> resolution=4, 5 style-convs, 3 ToRGBs
# ----------------------------------------------------------------------------
TARGET_IM_SIZE = 16
RESOLUTION = int(math.log2(TARGET_IM_SIZE))          # 4
LATENT_DIM = 64
FEAT_MAPS = 1024
MAX_FEATURES = 64
MAP_LAYERS = 8
TRUNC_CUTOFF = 4
TRUNC_WEIGHT = 0.7
DLATENT_AVG_BETA = 0.995
LRELU_SLOPE = 0.2
RGB_PAD = 128            # ToRGB output lanes padded 3 -> 128 for lane-dense compute/stores


def num_features(stage):
    return int(min(FEAT_MAPS // (2 ** stage), MAX_FEATURES))


def ema(a, b, w):
    # util.EMA(a, b, w) = w*a + (1-w)*b
    return w * a + (1.0 - w) * b


# ----------------------------------------------------------------------------
# Pallas kernels
# ----------------------------------------------------------------------------
def mapping_kernel(z_ref, w_ref, b_ref, avg_ref, dl_ref, dlt_ref, navg_ref,
                   *, num_layers, scale, eps=1e-8):
    # z: (N, D), w: (L, D, D) stored (in, out), b: (L, 1, D), avg: (1, D)
    x = z_ref[...].astype(jnp.float32)
    # PixelNorm over the latent dimension
    x = x * jax.lax.rsqrt(jnp.mean(x * x, axis=1, keepdims=True) + eps)
    for l in range(num_layers):
        x = jnp.dot(x, w_ref[l].astype(jnp.float32),
                    preferred_element_type=jnp.float32) * scale
        x = x + b_ref[l].astype(jnp.float32)
        x = jnp.where(x >= 0.0, x, LRELU_SLOPE * x)           # LeakyReLU(0.2)
    dl_ref[...] = x.astype(dl_ref.dtype)
    # track_W: EMA center of mass of W, then the truncation trick (fused here).
    batch_avg = jnp.mean(x, axis=0, keepdims=True)
    new_avg = ema(avg_ref[...].astype(jnp.float32), batch_avg, DLATENT_AVG_BETA)
    navg_ref[...] = new_avg.astype(navg_ref.dtype)
    dlt_ref[...] = ema(x, new_avg, TRUNC_WEIGHT).astype(dlt_ref.dtype)


def synthesis_kernel(dl_ref, dlt_ref, aw_ref, ab_ref, wf_ref, wsq_ref, cb_ref,
                     rw_ref, rb_ref, uz48_ref, uz816_ref, un48_ref, un816_ref,
                     n8_ref, n16_ref, o_ref, *, eps=1e-8):
    f32 = jnp.float32
    aff_scale = 1.0 / math.sqrt(LATENT_DIM)

    dl = dl_ref[0].astype(f32)       # (1, D) untruncated dlatent
    dlt = dlt_ref[0].astype(f32)     # (1, D) truncated dlatent

    def pick(layer_idx):
        # truncation trick (cutoff=4); no style mixing: the mixing branch is gated by a
        # host-side np.random.rand() in the reference -> deterministic no-mix path.
        return dlt if layer_idx < TRUNC_CUTOFF else dl

    def conv3x3_mod(l, x, h, w, lat, noise):
        # x: (h*w, Cin) VMEM-resident value.  Modulate / 3x3 conv (one K=9*Cin MXU
        # matmul) / demodulate / noise / bias / LeakyReLU, all fused.
        hw = h * w
        cin = x.shape[1]
        # style affine (EqualizedLinear(latent_dim, Cin), bias init 1)
        style = jnp.dot(lat, aw_ref[l].astype(f32),
                        preferred_element_type=f32) * aff_scale + ab_ref[l].astype(f32)
        # demodulation: d[o] = rsqrt(sum_{i,kh,kw} (w*style_i)^2 + eps); the style
        # independent wsq = sum_{kh,kw} w^2 is precomputed at init (hoisted out).
        d = jax.lax.rsqrt(jnp.dot(style * style, wsq_ref[l].astype(f32),
                                  preferred_element_type=f32) + eps)      # (1, Cout)
        # modulate the input once (no per-patch / per-tap style multiplies)
        xm = x * style
        # boundary masks implementing the zero padding for the 9 shifted views
        pix = jax.lax.broadcasted_iota(jnp.int32, (hw, 1), 0)
        row = pix // w
        col = pix % w
        zpad = jnp.zeros((w + 1, cin), f32)
        xflat = jnp.concatenate([zpad, xm, zpad], axis=0)     # (hw + 2w + 2, cin)
        cols = []
        for dy in (-1, 0, 1):
            for dx in (-1, 0, 1):
                start = (w + 1) + dy * w + dx
                sh = xflat[start:start + hw, :]               # shifted view, (hw, cin)
                mask = None
                if dy == -1:
                    mask = row >= 1
                elif dy == 1:
                    mask = row <= h - 2
                if dx == -1:
                    cm = col >= 1
                    mask = cm if mask is None else jnp.logical_and(mask, cm)
                elif dx == 1:
                    cm = col <= w - 2
                    mask = cm if mask is None else jnp.logical_and(mask, cm)
                if mask is not None:
                    sh = jnp.where(mask, sh, 0.0)
                cols.append(sh)
        patches = jnp.concatenate(cols, axis=1)               # (hw, 9*cin)
        acc = jnp.dot(patches, wf_ref[l].astype(f32),
                      preferred_element_type=f32)             # single K=9*cin matmul
        y = acc * d + cb_ref[l].astype(f32)
        if noise is not None:
            y = y + noise                                     # pre-scaled, per-pixel
        return jnp.where(y >= 0.0, y, LRELU_SLOPE * y)        # LeakyReLU(0.2)

    def to_rgb(t, x, skip):
        # TODO(synk): util.ToRGB is built with style_dim but its forward receives no
        # latent and its upsample filter is unknown; implemented as an equalized 1x1
        # conv + bias (output lanes zero-padded to 128) with a nearest-neighbour skip
        # upsample applied by the caller.
        cin = x.shape[1]
        y = jnp.dot(x, rw_ref[t].astype(f32),
                    preferred_element_type=f32) * (1.0 / math.sqrt(cin))
        y = y + rb_ref[t].astype(f32)
        if skip is not None:
            y = y + skip
        return y                                              # (hw, RGB_PAD)

    cfeat = ab_ref.shape[-1]
    # learned-constant stand-in: ones(N, num_features(2), 4, 4), channels-last & flat
    # TODO(synk): the reference hard-codes torch.ones(N, 512, 4, 4); num_features(2) is
    # used here so the shape is consistent with convs[0] at this config.
    x = jnp.ones((4 * 4, cfeat), f32)
    x = conv3x3_mod(0, x, 4, 4, pick(0), None)                # conv0: no noise

    up_zero = [uz48_ref, uz816_ref]
    up_nn = [un48_ref, un816_ref]
    noise_refs = [n8_ref, n16_ref]

    skip = None
    for i in range(RESOLUTION - 2):                           # i = 0, 1
        h = 2 ** (i + 2)                                      # current resolution: 4, 8
        if skip is not None:
            skip = jnp.dot(up_nn[i - 1][...].astype(f32), skip,
                           preferred_element_type=f32)        # NN upsample skip to h x h
        skip = to_rgb(i, x, skip)                             # (h*h, RGB_PAD)
        nz = noise_refs[i][0].astype(f32)                     # (4*h*h, 2) pre-scaled noise
        # zero-insertion upsample (ConvTranspose2d(stride=2) emulation) via 0/1 matrix
        # TODO(synk): like the reference implementation used before, the transposed conv
        # is emulated with unflipped (synthetic) weights.
        xu = jnp.dot(up_zero[i][...].astype(f32), x, preferred_element_type=f32)
        x = conv3x3_mod(2 * i + 1, xu, 2 * h, 2 * h, pick(2 * i + 1), nz[:, 0:1])
        x = conv3x3_mod(2 * i + 2, x, 2 * h, 2 * h, pick(2 * i + 2), nz[:, 1:2])

    skip = jnp.dot(up_nn[-1][...].astype(f32), skip, preferred_element_type=f32)
    rgb = to_rgb(RESOLUTION - 2, x, skip)                     # (HW, RGB_PAD) at full res

    # lane-dense (3, HW) store == NCHW layout for free; transpose is fully (8,128)-aligned
    rgb_t = jnp.transpose(rgb, (1, 0))                        # (RGB_PAD, HW)
    o_ref[0] = rgb_t[0:3, :].astype(o_ref.dtype)


# ----------------------------------------------------------------------------
# wrappers
# ----------------------------------------------------------------------------
_PARALLEL = pltpu.CompilerParams(dimension_semantics=("parallel",))


def mapping_forward(latent, params):
    n, d = latent.shape
    return pl.pallas_call(
        functools.partial(mapping_kernel, num_layers=params["map_w"].shape[0],
                          scale=1.0 / math.sqrt(d)),
        out_shape=(jax.ShapeDtypeStruct((n, d), jnp.float32),     # dlatent
                   jax.ShapeDtypeStruct((n, d), jnp.float32),     # dlatent truncated
                   jax.ShapeDtypeStruct((1, d), jnp.float32)),    # updated dlatent_avg
    )(latent, params["map_w"], params["map_b"], params["dlatent_avg"])


def synthesis_forward(dlatent, dlatent_trunc, params, noise_key):
    n, d = dlatent.shape
    hw_full = TARGET_IM_SIZE * TARGET_IM_SIZE
    s = params["noise_strength"]

    # per-layer noise, pre-scaled by noise_strength and packed lane-wise per resolution
    # TODO(synk): could be generated in-kernel with pltpu.prng_seed/stateful_normal.
    k8, k16 = jax.random.split(noise_key)
    noise8 = jax.random.normal(k8, (n, 8 * 8, 2), jnp.float32) * jnp.stack([s[1], s[2]])
    noise16 = jax.random.normal(k16, (n, 16 * 16, 2), jnp.float32) * jnp.stack([s[3], s[4]])

    dl3 = dlatent.reshape(n, 1, d)
    dlt3 = dlatent_trunc.reshape(n, 1, d)

    def full(a):
        nd = a.ndim
        return pl.BlockSpec(a.shape, lambda b: (0,) * nd)

    def per_b(a):
        nd = a.ndim
        return pl.BlockSpec((1,) + a.shape[1:], lambda b: (b,) + (0,) * (nd - 1))

    img = pl.pallas_call(
        synthesis_kernel,
        grid=(n,),
        in_specs=[
            per_b(dl3), per_b(dlt3),
            full(params["conv_aff_w"]), full(params["conv_aff_b"]),
            full(params["conv_wflat"]), full(params["conv_wsq"]),
            full(params["conv_bias"]),
            full(params["rgb_w"]), full(params["rgb_b"]),
            full(params["up_zero_4to8"]), full(params["up_zero_8to16"]),
            full(params["up_nn_4to8"]), full(params["up_nn_8to16"]),
            per_b(noise8), per_b(noise16),
        ],
        out_specs=pl.BlockSpec((1, 3, hw_full), lambda b: (b, 0, 0)),
        out_shape=jax.ShapeDtypeStruct((n, 3, hw_full), jnp.float32),
        compiler_params=_PARALLEL,
    )(dl3, dlt3, params["conv_aff_w"], params["conv_aff_b"], params["conv_wflat"],
      params["conv_wsq"], params["conv_bias"], params["rgb_w"], params["rgb_b"],
      params["up_zero_4to8"], params["up_zero_8to16"],
      params["up_nn_4to8"], params["up_nn_8to16"], noise8, noise16)

    # (N, 3, H*W) -> (N, 3, H, W): metadata-only reshape, already NCHW like the module
    return img.reshape(n, 3, TARGET_IM_SIZE, TARGET_IM_SIZE)


def style_generator_forward(latent, params, noise_key):
    dlatent, dlatent_trunc, new_dlatent_avg = mapping_forward(latent, params)
    # TODO(synk): new_dlatent_avg is the updated EMA buffer (a stateful buffer in the
    # PyTorch module); it is computed but not persisted across calls here.
    del new_dlatent_avg
    return synthesis_forward(dlatent, dlatent_trunc, params, noise_key)


# ----------------------------------------------------------------------------
# deterministic synthetic parameters (shapes follow the module __init__), plus the
# constant spatial upsample operators used by the fused kernel
# ----------------------------------------------------------------------------
def _zero_insert_matrix(hlo):
    """(4*hlo^2, hlo^2) operator: stride-2 zero-insertion 2x upsample on flat pixels."""
    hhi = 2 * hlo
    r = jnp.arange(hhi * hhi)
    i, j = r // hhi, r % hhi
    src = (i // 2) * hlo + (j // 2)
    valid = ((i % 2) == 0) & ((j % 2) == 0)
    return jax.nn.one_hot(src, hlo * hlo, dtype=jnp.float32) * valid[:, None].astype(jnp.float32)


def _nn_upsample_matrix(hlo):
    """(4*hlo^2, hlo^2) operator: nearest-neighbour 2x upsample on flat pixels."""
    hhi = 2 * hlo
    r = jnp.arange(hhi * hhi)
    i, j = r // hhi, r % hhi
    src = (i // 2) * hlo + (j // 2)
    return jax.nn.one_hot(src, hlo * hlo, dtype=jnp.float32)


def init_params(key):
    keys = iter(jax.random.split(key, 16))
    p = {}
    p["map_w"] = jax.random.normal(next(keys), (MAP_LAYERS, LATENT_DIM, LATENT_DIM), jnp.float32)
    p["map_b"] = jnp.zeros((MAP_LAYERS, 1, LATENT_DIM), jnp.float32)
    p["dlatent_avg"] = jnp.zeros((1, LATENT_DIM), jnp.float32)

    feats = {num_features(s) for s in range(2, RESOLUTION + 1)}
    assert len(feats) == 1, "stacked conv params assume a uniform channel count at this config"
    c = num_features(2)                                       # 64 for all layers here

    n_convs = 2 * (RESOLUTION - 2) + 1                        # 5
    conv_w = jax.random.normal(next(keys), (n_convs, 3, 3, c, c), jnp.float32)
    p["conv_wflat"] = conv_w.reshape(n_convs, 9 * c, c)       # tap-major (kh,kw,cin) rows
    p["conv_wsq"] = jnp.sum(conv_w * conv_w, axis=(1, 2))     # sum_k w^2, (n_convs, c, c)
    p["conv_aff_w"] = jax.random.normal(next(keys), (n_convs, LATENT_DIM, c), jnp.float32)
    p["conv_aff_b"] = jnp.ones((n_convs, 1, c), jnp.float32)
    p["conv_bias"] = 0.05 * jax.random.normal(next(keys), (n_convs, 1, c), jnp.float32)
    p["noise_strength"] = jnp.full((n_convs,), 0.1, jnp.float32)

    n_rgb = RESOLUTION - 1                                    # 3
    rgb_w = jax.random.normal(next(keys), (n_rgb, c, 3), jnp.float32)
    rgb_b = 0.05 * jax.random.normal(next(keys), (n_rgb, 1, 3), jnp.float32)
    # pad RGB outputs to 128 lanes (zero columns) for lane-dense compute & stores
    p["rgb_w"] = jnp.concatenate(
        [rgb_w, jnp.zeros((n_rgb, c, RGB_PAD - 3), jnp.float32)], axis=-1)
    p["rgb_b"] = jnp.concatenate(
        [rgb_b, jnp.zeros((n_rgb, 1, RGB_PAD - 3), jnp.float32)], axis=-1)

    # constant (non-learned) spatial upsample operators
    p["up_zero_4to8"] = _zero_insert_matrix(4)                # (64, 16)
    p["up_zero_8to16"] = _zero_insert_matrix(8)               # (256, 64)
    p["up_nn_4to8"] = _nn_upsample_matrix(4)                  # (64, 16)
    p["up_nn_8to16"] = _nn_upsample_matrix(8)                 # (256, 64)
    return p


if __name__ == "__main__":
    key = jax.random.PRNGKey(0)
    pkey, zkey, nkey = jax.random.split(key, 3)
    params = init_params(pkey)
    latent = jax.random.normal(zkey, (2, LATENT_DIM), jnp.float32)

    images = style_generator_forward(latent, params, nkey)
    images = jax.block_until_ready(images)

    assert images.shape == (2, 3, TARGET_IM_SIZE, TARGET_IM_SIZE), images.shape
    assert bool(jnp.all(jnp.isfinite(images)))
    print("KERNEL_OK")
</pallas_src>

<mosaic_0001>
module attributes {stable_mosaic.version = 11 : i64} {
  func.func @mapping_kernel(%arg0: memref<2x64xf32, #tpu.memory_space<vmem>>, %arg1: memref<8x64x64xf32, #tpu.memory_space<vmem>>, %arg2: memref<8x1x64xf32, #tpu.memory_space<vmem>>, %arg3: memref<1x64xf32, #tpu.memory_space<vmem>>, %arg4: memref<2x64xf32, #tpu.memory_space<vmem>>, %arg5: memref<2x64xf32, #tpu.memory_space<vmem>>, %arg6: memref<1x64xf32, #tpu.memory_space<vmem>>) attributes {dimension_semantics = [], scalar_prefetch = 0 : i64, scratch_operands = 0 : i64, tpu.core_type = #tpu.core_type<tc>} {
    %c0 = arith.constant 0 : index
    %c0_0 = arith.constant 0 : index
    %0 = vector.load %arg0[%c0, %c0_0] : memref<2x64xf32, #tpu.memory_space<vmem>>, vector<2x64xf32>
    %1 = arith.mulf %0, %0 : vector<2x64xf32>
    %cst = arith.constant dense<0.000000e+00> : vector<2xf32>
    %2 = vector.multi_reduction <add>, %1, %cst [1] : vector<2x64xf32> to vector<2xf32>
    %3 = vector.shape_cast %2 : vector<2xf32> to vector<2x1xf32>
    %cst_1 = arith.constant 6.400000e+01 : f32
    %4 = vector.broadcast %cst_1 : f32 to vector<2x1xf32>
    %5 = arith.divf %3, %4 : vector<2x1xf32>
    %cst_2 = arith.constant 9.99999993E-9 : f32
    %6 = vector.broadcast %cst_2 : f32 to vector<2x1xf32>
    %7 = arith.addf %5, %6 : vector<2x1xf32>
    %8 = math.rsqrt %7 : vector<2x1xf32>
    %9 = vector.broadcast %8 : vector<2x1xf32> to vector<2x64xf32>
    %10 = arith.mulf %0, %9 : vector<2x64xf32>
    %c0_3 = arith.constant 0 : index
    %c0_4 = arith.constant 0 : index
    %c0_5 = arith.constant 0 : index
    %11 = vector.load %arg1[%c0_3, %c0_4, %c0_5] : memref<8x64x64xf32, #tpu.memory_space<vmem>>, vector<1x64x64xf32>
    %12 = vector.shape_cast %11 : vector<1x64x64xf32> to vector<64x64xf32>
    %cst_6 = arith.constant dense<0.000000e+00> : vector<2x64xf32>
    %13 = tpu.matmul %10, %12, %cst_6 {dimension_numbers = #tpu.dot_dimension_numbers<[1], [0], [0], [1], [0, 0, 1, 1], [], []>} : vector<2x64xf32>, vector<64x64xf32>, vector<2x64xf32> -> vector<2x64xf32>
    %cst_7 = arith.constant 1.250000e-01 : f32
    %14 = vector.broadcast %cst_7 : f32 to vector<2x64xf32>
    %15 = arith.mulf %13, %14 : vector<2x64xf32>
    %c0_8 = arith.constant 0 : index
    %c0_9 = arith.constant 0 : index
    %c0_10 = arith.constant 0 : index
    %16 = vector.load %arg2[%c0_8, %c0_9, %c0_10] : memref<8x1x64xf32, #tpu.memory_space<vmem>>, vector<1x1x64xf32>
    %17 = vector.shape_cast %16 : vector<1x1x64xf32> to vector<1x64xf32>
    %18 = vector.broadcast %17 : vector<1x64xf32> to vector<2x64xf32>
    %19 = arith.addf %15, %18 : vector<2x64xf32>
    %cst_11 = arith.constant 0.000000e+00 : f32
    %20 = vector.broadcast %cst_11 : f32 to vector<2x64xf32>
    %21 = arith.cmpf oge, %19, %20 : vector<2x64xf32>
    %cst_12 = arith.constant 2.000000e-01 : f32
    %22 = vector.broadcast %cst_12 : f32 to vector<2x64xf32>
    %23 = arith.mulf %22, %19 : vector<2x64xf32>
    %24 = arith.select %21, %19, %23 : vector<2x64xi1>, vector<2x64xf32>
    %c1 = arith.constant 1 : index
    %c0_13 = arith.constant 0 : index
    %c0_14 = arith.constant 0 : index
    %25 = vector.load %arg1[%c1, %c0_13, %c0_14] : memref<8x64x64xf32, #tpu.memory_space<vmem>>, vector<1x64x64xf32>
    %26 = vector.shape_cast %25 : vector<1x64x64xf32> to vector<64x64xf32>
    %cst_15 = arith.constant dense<0.000000e+00> : vector<2x64xf32>
    %27 = tpu.matmul %24, %26, %cst_15 {dimension_numbers = #tpu.dot_dimension_numbers<[1], [0], [0], [1], [0, 0, 1, 1], [], []>} : vector<2x64xf32>, vector<64x64xf32>, vector<2x64xf32> -> vector<2x64xf32>
    %cst_16 = arith.constant 1.250000e-01 : f32
    %28 = vector.broadcast %cst_16 : f32 to vector<2x64xf32>
    %29 = arith.mulf %27, %28 : vector<2x64xf32>
    %c1_17 = arith.constant 1 : index
    %c0_18 = arith.constant 0 : index
    %c0_19 = arith.constant 0 : index
    %30 = vector.load %arg2[%c1_17, %c0_18, %c0_19] : memref<8x1x64xf32, #tpu.memory_space<vmem>>, vector<1x1x64xf32>
    %31 = vector.shape_cast %30 : vector<1x1x64xf32> to vector<1x64xf32>
    %32 = vector.broadcast %31 : vector<1x64xf32> to vector<2x64xf32>
    %33 = arith.addf %29, %32 : vector<2x64xf32>
    %cst_20 = arith.constant 0.000000e+00 : f32
    %34 = vector.broadcast %cst_20 : f32 to vector<2x64xf32>
    %35 = arith.cmpf oge, %33, %34 : vector<2x64xf32>
    %cst_21 = arith.constant 2.000000e-01 : f32
    %36 = vector.broadcast %cst_21 : f32 to vector<2x64xf32>
    %37 = arith.mulf %36, %33 : vector<2x64xf32>
    %38 = arith.select %35, %33, %37 : vector<2x64xi1>, vector<2x64xf32>
    %c2 = arith.constant 2 : index
    %c0_22 = arith.constant 0 : index
    %c0_23 = arith.constant 0 : index
    %39 = vector.load %arg1[%c2, %c0_22, %c0_23] : memref<8x64x64xf32, #tpu.memory_space<vmem>>, vector<1x64x64xf32>
    %40 = vector.shape_cast %39 : vector<1x64x64xf32> to vector<64x64xf32>
    %cst_24 = arith.constant dense<0.000000e+00> : vector<2x64xf32>
    %41 = tpu.matmul %38, %40, %cst_24 {dimension_numbers = #tpu.dot_dimension_numbers<[1], [0], [0], [1], [0, 0, 1, 1], [], []>} : vector<2x64xf32>, vector<64x64xf32>, vector<2x64xf32> -> vector<2x64xf32>
    %cst_25 = arith.constant 1.250000e-01 : f32
    %42 = vector.broadcast %cst_25 : f32 to vector<2x64xf32>
    %43 = arith.mulf %41, %42 : vector<2x64xf32>
    %c2_26 = arith.constant 2 : index
    %c0_27 = arith.constant 0 : index
    %c0_28 = arith.constant 0 : index
    %44 = vector.load %arg2[%c2_26, %c0_27, %c0_28] : memref<8x1x64xf32, #tpu.memory_space<vmem>>, vector<1x1x64xf32>
    %45 = vector.shape_cast %44 : vector<1x1x64xf32> to vector<1x64xf32>
    %46 = vector.broadcast %45 : vector<1x64xf32> to vector<2x64xf32>
    %47 = arith.addf %43, %46 : vector<2x64xf32>
    %cst_29 = arith.constant 0.000000e+00 : f32
    %48 = vector.broadcast %cst_29 : f32 to vector<2x64xf32>
    %49 = arith.cmpf oge, %47, %48 : vector<2x64xf32>
    %cst_30 = arith.constant 2.000000e-01 : f32
    %50 = vector.broadcast %cst_30 : f32 to vector<2x64xf32>
    %51 = arith.mulf %50, %47 : vector<2x64xf32>
    %52 = arith.select %49, %47, %51 : vector<2x64xi1>, vector<2x64xf32>
    %c3 = arith.constant 3 : index
    %c0_31 = arith.constant 0 : index
    %c0_32 = arith.constant 0 : index
    %53 = vector.load %arg1[%c3, %c0_31, %c0_32] : memref<8x64x64xf32, #tpu.memory_space<vmem>>, vector<1x64x64xf32>
    %54 = vector.shape_cast %53 : vector<1x64x64xf32> to vector<64x64xf32>
    %cst_33 = arith.constant dense<0.000000e+00> : vector<2x64xf32>
    %55 = tpu.matmul %52, %54, %cst_33 {dimension_numbers = #tpu.dot_dimension_numbers<[1], [0], [0], [1], [0, 0, 1, 1], [], []>} : vector<2x64xf32>, vector<64x64xf32>, vector<2x64xf32> -> vector<2x64xf32>
    %cst_34 = arith.constant 1.250000e-01 : f32
    %56 = vector.broadcast %cst_34 : f32 to vector<2x64xf32>
    %57 = arith.mulf %55, %56 : vector<2x64xf32>
    %c3_35 = arith.constant 3 : index
    %c0_36 = arith.constant 0 : index
    %c0_37 = arith.constant 0 : index
    %58 = vector.load %arg2[%c3_35, %c0_36, %c0_37] : memref<8x1x64xf32, #tpu.memory_space<vmem>>, vector<1x1x64xf32>
    %59 = vector.shape_cast %58 : vector<1x1x64xf32> to vector<1x64xf32>
    %60 = vector.broadcast %59 : vector<1x64xf32> to vector<2x64xf32>
    %61 = arith.addf %57, %60 : vector<2x64xf32>
    %cst_38 = arith.constant 0.000000e+00 : f32
    %62 = vector.broadcast %cst_38 : f32 to vector<2x64xf32>
    %63 = arith.cmpf oge, %61, %62 : vector<2x64xf32>
    %cst_39 = arith.constant 2.000000e-01 : f32
    %64 = vector.broadcast %cst_39 : f32 to vector<2x64xf32>
    %65 = arith.mulf %64, %61 : vector<2x64xf32>
    %66 = arith.select %63, %61, %65 : vector<2x64xi1>, vector<2x64xf32>
    %c4 = arith.constant 4 : index
    %c0_40 = arith.constant 0 : index
    %c0_41 = arith.constant 0 : index
    %67 = vector.load %arg1[%c4, %c0_40, %c0_41] : memref<8x64x64xf32, #tpu.memory_space<vmem>>, vector<1x64x64xf32>
    %68 = vector.shape_cast %67 : vector<1x64x64xf32> to vector<64x64xf32>
    %cst_42 = arith.constant dense<0.000000e+00> : vector<2x64xf32>
    %69 = tpu.matmul %66, %68, %cst_42 {dimension_numbers = #tpu.dot_dimension_numbers<[1], [0], [0], [1], [0, 0, 1, 1], [], []>} : vector<2x64xf32>, vector<64x64xf32>, vector<2x64xf32> -> vector<2x64xf32>
    %cst_43 = arith.constant 1.250000e-01 : f32
    %70 = vector.broadcast %cst_43 : f32 to vector<2x64xf32>
    %71 = arith.mulf %69, %70 : vector<2x64xf32>
    %c4_44 = arith.constant 4 : index
    %c0_45 = arith.constant 0 : index
    %c0_46 = arith.constant 0 : index
    %72 = vector.load %arg2[%c4_44, %c0_45, %c0_46] : memref<8x1x64xf32, #tpu.memory_space<vmem>>, vector<1x1x64xf32>
    %73 = vector.shape_cast %72 : vector<1x1x64xf32> to vector<1x64xf32>
    %74 = vector.broadcast %73 : vector<1x64xf32> to vector<2x64xf32>
    %75 = arith.addf %71, %74 : vector<2x64xf32>
    %cst_47 = arith.constant 0.000000e+00 : f32
    %76 = vector.broadcast %cst_47 : f32 to vector<2x64xf32>
    %77 = arith.cmpf oge, %75, %76 : vector<2x64xf32>
    %cst_48 = arith.constant 2.000000e-01 : f32
    %78 = vector.broadcast %cst_48 : f32 to vector<2x64xf32>
    %79 = arith.mulf %78, %75 : vector<2x64xf32>
    %80 = arith.select %77, %75, %79 : vector<2x64xi1>, vector<2x64xf32>
    %c5 = arith.constant 5 : index
    %c0_49 = arith.constant 0 : index
    %c0_50 = arith.constant 0 : index
    %81 = vector.load %arg1[%c5, %c0_49, %c0_50] : memref<8x64x64xf32, #tpu.memory_space<vmem>>, vector<1x64x64xf32>
    %82 = vector.shape_cast %81 : vector<1x64x64xf32> to vector<64x64xf32>
    %cst_51 = arith.constant dense<0.000000e+00> : vector<2x64xf32>
    %83 = tpu.matmul %80, %82, %cst_51 {dimension_numbers = #tpu.dot_dimension_numbers<[1], [0], [0], [1], [0, 0, 1, 1], [], []>} : vector<2x64xf32>, vector<64x64xf32>, vector<2x64xf32> -> vector<2x64xf32>
    %cst_52 = arith.constant 1.250000e-01 : f32
    %84 = vector.broadcast %cst_52 : f32 to vector<2x64xf32>
    %85 = arith.mulf %83, %84 : vector<2x64xf32>
    %c5_53 = arith.constant 5 : index
    %c0_54 = arith.constant 0 : index
    %c0_55 = arith.constant 0 : index
    %86 = vector.load %arg2[%c5_53, %c0_54, %c0_55] : memref<8x1x64xf32, #tpu.memory_space<vmem>>, vector<1x1x64xf32>
    %87 = vector.shape_cast %86 : vector<1x1x64xf32> to vector<1x64xf32>
    %88 = vector.broadcast %87 : vector<1x64xf32> to vector<2x64xf32>
    %89 = arith.addf %85, %88 : vector<2x64xf32>
    %cst_56 = arith.constant 0.000000e+00 : f32
    %90 = vector.broadcast %cst_56 : f32 to vector<2x64xf32>
    %91 = arith.cmpf oge, %89, %90 : vector<2x64xf32>
    %cst_57 = arith.constant 2.000000e-01 : f32
    %92 = vector.broadcast %cst_57 : f32 to vector<2x64xf32>
    %93 = arith.mulf %92, %89 : vector<2x64xf32>
    %94 = arith.select %91, %89, %93 : vector<2x64xi1>, vector<2x64xf32>
    %c6 = arith.constant 6 : index
    %c0_58 = arith.constant 0 : index
    %c0_59 = arith.constant 0 : index
    %95 = vector.load %arg1[%c6, %c0_58, %c0_59] : memref<8x64x64xf32, #tpu.memory_space<vmem>>, vector<1x64x64xf32>
    %96 = vector.shape_cast %95 : vector<1x64x64xf32> to vector<64x64xf32>
    %cst_60 = arith.constant dense<0.000000e+00> : vector<2x64xf32>
    %97 = tpu.matmul %94, %96, %cst_60 {dimension_numbers = #tpu.dot_dimension_numbers<[1], [0], [0], [1], [0, 0, 1, 1], [], []>} : vector<2x64xf32>, vector<64x64xf32>, vector<2x64xf32> -> vector<2x64xf32>
    %cst_61 = arith.constant 1.250000e-01 : f32
    %98 = vector.broadcast %cst_61 : f32 to vector<2x64xf32>
    %99 = arith.mulf %97, %98 : vector<2x64xf32>
    %c6_62 = arith.constant 6 : index
    %c0_63 = arith.constant 0 : index
    %c0_64 = arith.constant 0 : index
    %100 = vector.load %arg2[%c6_62, %c0_63, %c0_64] : memref<8x1x64xf32, #tpu.memory_space<vmem>>, vector<1x1x64xf32>
    %101 = vector.shape_cast %100 : vector<1x1x64xf32> to vector<1x64xf32>
    %102 = vector.broadcast %101 : vector<1x64xf32> to vector<2x64xf32>
    %103 = arith.addf %99, %102 : vector<2x64xf32>
    %cst_65 = arith.constant 0.000000e+00 : f32
    %104 = vector.broadcast %cst_65 : f32 to vector<2x64xf32>
    %105 = arith.cmpf oge, %103, %104 : vector<2x64xf32>
    %cst_66 = arith.constant 2.000000e-01 : f32
    %106 = vector.broadcast %cst_66 : f32 to vector<2x64xf32>
    %107 = arith.mulf %106, %103 : vector<2x64xf32>
    %108 = arith.select %105, %103, %107 : vector<2x64xi1>, vector<2x64xf32>
    %c7 = arith.constant 7 : index
    %c0_67 = arith.constant 0 : index
    %c0_68 = arith.constant 0 : index
    %109 = vector.load %arg1[%c7, %c0_67, %c0_68] : memref<8x64x64xf32, #tpu.memory_space<vmem>>, vector<1x64x64xf32>
    %110 = vector.shape_cast %109 : vector<1x64x64xf32> to vector<64x64xf32>
    %cst_69 = arith.constant dense<0.000000e+00> : vector<2x64xf32>
    %111 = tpu.matmul %108, %110, %cst_69 {dimension_numbers = #tpu.dot_dimension_numbers<[1], [0], [0], [1], [0, 0, 1, 1], [], []>} : vector<2x64xf32>, vector<64x64xf32>, vector<2x64xf32> -> vector<2x64xf32>
    %cst_70 = arith.constant 1.250000e-01 : f32
    %112 = vector.broadcast %cst_70 : f32 to vector<2x64xf32>
    %113 = arith.mulf %111, %112 : vector<2x64xf32>
    %c7_71 = arith.constant 7 : index
    %c0_72 = arith.constant 0 : index
    %c0_73 = arith.constant 0 : index
    %114 = vector.load %arg2[%c7_71, %c0_72, %c0_73] : memref<8x1x64xf32, #tpu.memory_space<vmem>>, vector<1x1x64xf32>
    %115 = vector.shape_cast %114 : vector<1x1x64xf32> to vector<1x64xf32>
    %116 = vector.broadcast %115 : vector<1x64xf32> to vector<2x64xf32>
    %117 = arith.addf %113, %116 : vector<2x64xf32>
    %cst_74 = arith.constant 0.000000e+00 : f32
    %118 = vector.broadcast %cst_74 : f32 to vector<2x64xf32>
    %119 = arith.cmpf oge, %117, %118 : vector<2x64xf32>
    %cst_75 = arith.constant 2.000000e-01 : f32
    %120 = vector.broadcast %cst_75 : f32 to vector<2x64xf32>
    %121 = arith.mulf %120, %117 : vector<2x64xf32>
    %122 = arith.select %119, %117, %121 : vector<2x64xi1>, vector<2x64xf32>
    %c0_76 = arith.constant 0 : index
    %c0_77 = arith.constant 0 : index
    %123 = vector.load %arg4[%c0_76, %c0_77] : memref<2x64xf32, #tpu.memory_space<vmem>>, vector<2x64xf32>
    tpu.vector_store %arg4[%c0_76, %c0_77], %122 {strides = array<i32>} : memref<2x64xf32, #tpu.memory_space<vmem>>, vector<2x64xf32>,
    %cst_78 = arith.constant dense<0.000000e+00> : vector<64xf32>
    %124 = vector.multi_reduction <add>, %122, %cst_78 [0] : vector<2x64xf32> to vector<64xf32>
    %125 = vector.shape_cast %124 : vector<64xf32> to vector<1x64xf32>
    %cst_79 = arith.constant 2.000000e+00 : f32
    %126 = vector.broadcast %cst_79 : f32 to vector<1x64xf32>
    %127 = arith.divf %125, %126 : vector<1x64xf32>
    %c0_80 = arith.constant 0 : index
    %c0_81 = arith.constant 0 : index
    %128 = vector.load %arg3[%c0_80, %c0_81] : memref<1x64xf32, #tpu.memory_space<vmem>>, vector<1x64xf32>
    %cst_82 = arith.constant 9.950000e-01 : f32
    %129 = vector.broadcast %cst_82 : f32 to vector<1x64xf32>
    %130 = arith.mulf %129, %128 : vector<1x64xf32>
    %cst_83 = arith.constant 5.000000e-03 : f32
    %131 = vector.broadcast %cst_83 : f32 to vector<1x64xf32>
    %132 = arith.mulf %131, %127 : vector<1x64xf32>
    %133 = arith.addf %130, %132 : vector<1x64xf32>
    %c0_84 = arith.constant 0 : index
    %c0_85 = arith.constant 0 : index
    %134 = vector.load %arg6[%c0_84, %c0_85] : memref<1x64xf32, #tpu.memory_space<vmem>>, vector<1x64xf32>
    tpu.vector_store %arg6[%c0_84, %c0_85], %133 {strides = array<i32>} : memref<1x64xf32, #tpu.memory_space<vmem>>, vector<1x64xf32>,
    %cst_86 = arith.constant 0.699999988 : f32
    %135 = vector.broadcast %cst_86 : f32 to vector<2x64xf32>
    %136 = arith.mulf %135, %122 : vector<2x64xf32>
    %cst_87 = arith.constant 3.000000e-01 : f32
    %137 = vector.broadcast %cst_87 : f32 to vector<1x64xf32>
    %138 = arith.mulf %137, %133 : vector<1x64xf32>
    %139 = vector.broadcast %138 : vector<1x64xf32> to vector<2x64xf32>
    %140 = arith.addf %136, %139 : vector<2x64xf32>
    %c0_88 = arith.constant 0 : index
    %c0_89 = arith.constant 0 : index
    %141 = vector.load %arg5[%c0_88, %c0_89] : memref<2x64xf32, #tpu.memory_space<vmem>>, vector<2x64xf32>
    tpu.vector_store %arg5[%c0_88, %c0_89], %140 {strides = array<i32>} : memref<2x64xf32, #tpu.memory_space<vmem>>, vector<2x64xf32>,
    return
  }
}

</mosaic_0001>

<llo_original>
// kernel: tpu_custom_call.1
$region0: #{tpu_custom_call.1}
  #allocation0 [shape = 'u32[]', space=smem, size = 0x4, offset = 0x4, fixed_abs, tag = 'smem constant byte address 0x4 - core index']
  #allocation1 [shape = 'u32[144,128]{1,0:T(1,128)}', space=vmem, size = 0x12000, scoped, tag = 'internal scratch']
  %s0 = inlined_call_operand.hbm [shape: f32[2,64], index: 0, kind: input, shape index: {}]
  %s1 = inlined_call_operand.hbm [shape: f32[8,64,64], index: 1, kind: input, shape index: {}]
  %s2 = inlined_call_operand.hbm [shape: f32[8,1,64], index: 2, kind: input, shape index: {}]
  %s3 = inlined_call_operand.vmem [shape: f32[1,64], index: 3, kind: input, shape index: {}]
  %s4 = inlined_call_operand.hbm [shape: f32[2,64], index: 4, kind: output, shape index: {0}]
  %s5 = inlined_call_operand.hbm [shape: f32[2,64], index: 5, kind: output, shape index: {1}]
  %s6 = inlined_call_operand.hbm [shape: f32[1,64], index: 6, kind: output, shape index: {2}]
  %7 = xla_tuple %s4, %s5, %s6
  %s8 = sld [smem:[#allocation0]]
  $region54: #{tpu_custom_call.1} parent=0
    _
  %s10 = ssub.s32 1, %s8
  %s11 = scalar_select 0, %s10, %s8
  $region1: #{tpu_custom_call.1} parent=0
    #allocation2 [shape = 'u8[1024]{0}', space=vmem, size = 0x400, scoped, tag = 'input window, operand 0, single buffered']
    #allocation3 [shape = 's32[1]{0}', space=sflag, size = 0x4, scoped, tag = 'scoped memory for tpu_custom_call.1']
    #allocation4 [shape = 's32[1]{0}', space=sflag, size = 0x4, scoped, tag = 'scoped memory for tpu_custom_call.1']
    #allocation5 [shape = 'u8[262144]{0}', space=vmem, size = 0x40000, scoped, tag = 'input window, operand 1, single buffered']
    #allocation6 [shape = 's32[1]{0}', space=sflag, size = 0x4, scoped, tag = 'scoped memory for tpu_custom_call.1']
    #allocation7 [shape = 'u8[4096]{0}', space=vmem, size = 0x1000, scoped, tag = 'input window, operand 2, single buffered']
    #allocation8 [shape = 'u8[1024]{0}', space=vmem, size = 0x400, scoped, tag = 'output window, operand 0, single buffered']
    #allocation9 [shape = 'u8[1024]{0}', space=vmem, size = 0x400, scoped, tag = 'output window, operand 1, single buffered']
    #allocation10 [shape = 's32[1]{0}', space=sflag, size = 0x4, scoped, tag = 'scoped memory for tpu_custom_call.1']
    #allocation11 [shape = 'u8[512]{0}', space=vmem, size = 0x400, scoped, tag = 'output window, operand 2, single buffered']
    %12 = vsyncpa [#allocation3], 0
    %13 = vsyncpa [#allocation6], 0
    %14 = vsyncpa [#allocation4], 0
    %15 = vsyncpa [#allocation10], 0
    // Predicated region
    $region2: #{tpu_custom_call.1} parent=1 // pred_check
      _
    $region3: #{tpu_custom_call.1} parent=1 // pred_check_branch
      %17 = sbr.rel (0) target = $region5
    $region4: #{tpu_custom_call.1} parent=1 // pred_region
      %s19 = ssub.s32 32, 32
      %20 = vsyncadd [#allocation3], %s19
      %s22 = sshll.u32 [#allocation2], 4
      %s23 = int_to_ptr.vmem [resolvable:$true] %s22
      %25 = dma.hbm_to_vmem [thread:$0]  %s0, 32, %s23, [#allocation3]
    $region5: #{tpu_custom_call.1} parent=1 // pred_fallthru
      _
    // Predicated region
    $region6: #{tpu_custom_call.1} parent=1 // pred_check
      _
    $region7: #{tpu_custom_call.1} parent=1 // pred_check_branch
      %27 = sbr.rel (0) target = $region9
    $region8: #{tpu_custom_call.1} parent=1 // pred_region
      %s29 = ssub.s32 8192, 8192
      %30 = vsyncadd [#allocation6], %s29
      %s31 = sshll.u32 [#allocation5], 4
      %s32 = int_to_ptr.vmem [resolvable:$true] %s31
      %37 = dma.hbm_to_vmem [thread:$0]  %s1, 8192, %s32, [#allocation6], 128, 128, 8
    $region9: #{tpu_custom_call.1} parent=1 // pred_fallthru
      _
    // Predicated region
    $region10: #{tpu_custom_call.1} parent=1 // pred_check
      _
    $region11: #{tpu_custom_call.1} parent=1 // pred_check_branch
      %39 = sbr.rel (0) target = $region13
    $region12: #{tpu_custom_call.1} parent=1 // pred_region
      %s41 = ssub.s32 128, 128
      %42 = vsyncadd [#allocation6], %s41
      %s43 = sshll.u32 [#allocation7], 4
      %s44 = int_to_ptr.vmem [resolvable:$true] %s43
      %49 = dma.hbm_to_vmem [thread:$0]  %s2, 128, %s44, [#allocation6], 16, 16, 1
    $region13: #{tpu_custom_call.1} parent=1 // pred_fallthru
      _
    // Predicated region
    $region14: #{tpu_custom_call.1} parent=1 // pred_check
      _
    $region15: #{tpu_custom_call.1} parent=1 // pred_check_branch
      %51 = sbr.rel (0) target = $region17
    $region16: #{tpu_custom_call.1} parent=1 // pred_region
      _
    $region17: #{tpu_custom_call.1} parent=1 // pred_fallthru
      _
    // Predicated region
    $region18: #{tpu_custom_call.1} parent=1 // pred_check
      _
    $region19: #{tpu_custom_call.1} parent=1 // pred_check_branch
      %53 = sbr.rel (0) target = $region21
    $region20: #{tpu_custom_call.1} parent=1 // pred_region
      %54 = dma.done [#allocation3], 32
    $region21: #{tpu_custom_call.1} parent=1 // pred_fallthru
      _
    // Predicated region
    $region22: #{tpu_custom_call.1} parent=1 // pred_check
      _
    $region23: #{tpu_custom_call.1} parent=1 // pred_check_branch
      %56 = sbr.rel (0) target = $region25
    $region24: #{tpu_custom_call.1} parent=1 // pred_region
      %57 = dma.done [#allocation6], 8192
    $region25: #{tpu_custom_call.1} parent=1 // pred_fallthru
      _
    // Predicated region
    $region26: #{tpu_custom_call.1} parent=1 // pred_check
      _
    $region27: #{tpu_custom_call.1} parent=1 // pred_check_branch
      %59 = sbr.rel (0) target = $region29
    $region28: #{tpu_custom_call.1} parent=1 // pred_region
      %60 = dma.done [#allocation6], 128
    $region29: #{tpu_custom_call.1} parent=1 // pred_fallthru
      _
    %v61 = vld [vmem:[#allocation2] sm:$0x3]
    %v62 = vmul.f32 %v61, %v61
    %vm63 = vcmask 517120
    %v64 = vsel %vm63, %v62, 0.0
    %65 = vadd.xlane.f32.xlu0 %v64
    %v66 = vpop.xlane.xlu0 %65
    %v67 = vrcp.pop 64.0
    %v68 = vmul.f32 %v66, %v67
    %v69 = vadd.f32 %v68, 1e-08
    %v70 = vrsqrt.pop %v69
    %v71 = vmul.f32 %v61, %v70
    %v72 = vld [vmem:[#allocation5] sm:$0xff]
    %v73 = vld [vmem:[#allocation5 + $0x8] sm:$0xff]
    %v74 = vld [vmem:[#allocation5 + $0x10] sm:$0xff]
    %v75 = vld [vmem:[#allocation5 + $0x18] sm:$0xff]
    %v76 = vld [vmem:[#allocation5 + $0x20] sm:$0xff]
    %v77 = vld [vmem:[#allocation5 + $0x28] sm:$0xff]
    %v78 = vld [vmem:[#allocation5 + $0x30] sm:$0xff]
    %v79 = vld [vmem:[#allocation5 + $0x38] sm:$0xff]
    %vm80 = vcmask 523264
    %v82 = vsel %vm80, %v71, 0
    %84 = vmatprep.subr.mxu0 0.0
    %85 = vmatpush1.msra.mxu0 0.0
    %86 = vmatprep.subr.mxu0 0.0
    %87 = vmatpush1.msra.mxu0 0.0
    %88 = vmatprep.subr.mxu0 0.0
    %89 = vmatpush1.msra.mxu0 0.0
    %90 = vmatprep.subr.mxu0 0.0
    %91 = vmatpush1.msra.mxu0 0.0
    %92 = vmatprep.subr.mxu0 0.0
    %93 = vmatpush1.msra.mxu0 0.0
    %94 = vmatprep.subr.mxu0 0.0
    %95 = vmatpush1.msra.mxu0 0.0
    %96 = vmatprep.subr.mxu0 0.0
    %97 = vmatpush1.msra.mxu0 0.0
    %98 = vmatprep.subr.mxu0 0.0
    %99 = vmatpush1.msra.mxu0 0.0
    %100 = vmatprep.subr.mxu0 0.0
    %101 = vmatpush1.msra.mxu0 %v79
    %102 = vmatprep.subr.mxu0 0.0
    %103 = vmatpush1.msra.mxu0 %v78
    %104 = vmatprep.subr.mxu0 0.0
    %105 = vmatpush1.msra.mxu0 %v77
    %106 = vmatprep.subr.mxu0 0.0
    %107 = vmatpush1.msra.mxu0 %v76
    %108 = vmatprep.subr.mxu0 0.0
    %109 = vmatpush1.msra.mxu0 %v75
    %110 = vmatprep.subr.mxu0 0.0
    %111 = vmatpush1.msra.mxu0 %v74
    %112 = vmatprep.subr.mxu0 0.0
    %113 = vmatpush1.msra.mxu0 %v73
    %114 = vmatprep.subr.mxu0 0.0
    %115 = vmatpush1.msra.mxu0 %v72
    %116 = vmatprep.subr.mxu0 0.0
    %117 = vmatpush2.msra.mxu0 0.0
    %118 = vmatprep.subr.mxu0 0.0
    %119 = vmatpush2.msra.mxu0 0.0
    %120 = vmatprep.subr.mxu0 0.0
    %121 = vmatpush2.msra.mxu0 0.0
    %122 = vmatprep.subr.mxu0 0.0
    %123 = vmatpush2.msra.mxu0 0.0
    %124 = vmatprep.subr.mxu0 0.0
    %125 = vmatpush2.msra.mxu0 0.0
    %126 = vmatprep.subr.mxu0 0.0
    %127 = vmatpush2.msra.mxu0 0.0
    %128 = vmatprep.subr.mxu0 0.0
    %129 = vmatpush2.msra.mxu0 0.0
    %130 = vmatprep.subr.mxu0 0.0
    %131 = vmatpush2.msra.mxu0 0.0
    %132 = vmatprep.subr.mxu0 0.0
    %133 = vmatpush2.msra.mxu0 0.0
    %134 = vmatprep.subr.mxu0 0.0
    %135 = vmatpush2.msra.mxu0 0.0
    %136 = vmatprep.subr.mxu0 0.0
    %137 = vmatpush2.msra.mxu0 0.0
    %138 = vmatprep.subr.mxu0 0.0
    %139 = vmatpush2.msra.mxu0 0.0
    %140 = vmatprep.subr.mxu0 0.0
    %141 = vmatpush2.msra.mxu0 0.0
    %142 = vmatprep.subr.mxu0 0.0
    %143 = vmatpush2.msra.mxu0 0.0
    %144 = vmatprep.subr.mxu0 0.0
    %145 = vmatpush2.msra.mxu0 0.0
    %146 = vmatprep.subr.mxu0 0.0
    %147 = vmatpush2.msra.mxu0 0.0
    %148 = vmatprep.mubr.f32.mxu0 0.0
    %149 = vmatmul.mubr.f32.gmra.mxu0 %v82
    %v150 = vpop.f32.mrf.mxu0
    %v151 = vadd.f32 0.0, %v150
    %v152 = vpop.f32.mrf.mxu0
    %153 = vdwg.mxu0
    %v154 = vmul.f32 %v151, 0.125
    %v155 = vld [vmem:[#allocation7] sm:$0x1]
    %v157 = vlaneseq
    %v158 = vshrl.u32 %v157, 7
    %v159 = vsub.s32 0, %v158
    %v160 = vrot.slane %v155, %v159
    %v162 = vadd.f32 %v154, %v160
    %vm163 = vcmp.ge.f32.partialorder %v162, 0.0
    %v164 = vmul.f32 %v162, 0.2
    %v165 = vsel %vm163, %v162, %v164
    %s166 = scalar_lea.vmem [#allocation5], 64
    %v167 = vld [vmem:[%s166] sm:$0xff]
    %v168 = vld [vmem:[%s166 + $0x8] sm:$0xff]
    %v169 = vld [vmem:[%s166 + $0x10] sm:$0xff]
    %v170 = vld [vmem:[%s166 + $0x18] sm:$0xff]
    %v171 = vld [vmem:[%s166 + $0x20] sm:$0xff]
    %v172 = vld [vmem:[%s166 + $0x28] sm:$0xff]
    %v173 = vld [vmem:[%s166 + $0x30] sm:$0xff]
    %v174 = vld [vmem:[%s166 + $0x38] sm:$0xff]
    %v176 = vsel %vm80, %v165, 0
    %178 = vmatprep.subr.mxu0 0.0
    %179 = vmatpush1.msra.mxu0 0.0
    %180 = vmatprep.subr.mxu0 0.0
    %181 = vmatpush1.msra.mxu0 0.0
    %182 = vmatprep.subr.mxu0 0.0
    %183 = vmatpush1.msra.mxu0 0.0
    %184 = vmatprep.subr.mxu0 0.0
    %185 = vmatpush1.msra.mxu0 0.0
    %186 = vmatprep.subr.mxu0 0.0
    %187 = vmatpush1.msra.mxu0 0.0
    %188 = vmatprep.subr.mxu0 0.0
    %189 = vmatpush1.msra.mxu0 0.0
    %190 = vmatprep.subr.mxu0 0.0
    %191 = vmatpush1.msra.mxu0 0.0
    %192 = vmatprep.subr.mxu0 0.0
    %193 = vmatpush1.msra.mxu0 0.0
    %194 = vmatprep.subr.mxu0 0.0
    %195 = vmatpush1.msra.mxu0 %v174
    %196 = vmatprep.subr.mxu0 0.0
    %197 = vmatpush1.msra.mxu0 %v173
    %198 = vmatprep.subr.mxu0 0.0
    %199 = vmatpush1.msra.mxu0 %v172
    %200 = vmatprep.subr.mxu0 0.0
    %201 = vmatpush1.msra.mxu0 %v171
    %202 = vmatprep.subr.mxu0 0.0
    %203 = vmatpush1.msra.mxu0 %v170
    %204 = vmatprep.subr.mxu0 0.0
    %205 = vmatpush1.msra.mxu0 %v169
    %206 = vmatprep.subr.mxu0 0.0
    %207 = vmatpush1.msra.mxu0 %v168
    %208 = vmatprep.subr.mxu0 0.0
    %209 = vmatpush1.msra.mxu0 %v167
    %210 = vmatprep.subr.mxu0 0.0
    %211 = vmatpush2.msra.mxu0 0.0
    %212 = vmatprep.subr.mxu0 0.0
    %213 = vmatpush2.msra.mxu0 0.0
    %214 = vmatprep.subr.mxu0 0.0
    %215 = vmatpush2.msra.mxu0 0.0
    %216 = vmatprep.subr.mxu0 0.0
    %217 = vmatpush2.msra.mxu0 0.0
    %218 = vmatprep.subr.mxu0 0.0
    %219 = vmatpush2.msra.mxu0 0.0
    %220 = vmatprep.subr.mxu0 0.0
    %221 = vmatpush2.msra.mxu0 0.0
    %222 = vmatprep.subr.mxu0 0.0
    %223 = vmatpush2.msra.mxu0 0.0
    %224 = vmatprep.subr.mxu0 0.0
    %225 = vmatpush2.msra.mxu0 0.0
    %226 = vmatprep.subr.mxu0 0.0
    %227 = vmatpush2.msra.mxu0 0.0
    %228 = vmatprep.subr.mxu0 0.0
    %229 = vmatpush2.msra.mxu0 0.0
    %230 = vmatprep.subr.mxu0 0.0
    %231 = vmatpush2.msra.mxu0 0.0
    %232 = vmatprep.subr.mxu0 0.0
    %233 = vmatpush2.msra.mxu0 0.0
    %234 = vmatprep.subr.mxu0 0.0
    %235 = vmatpush2.msra.mxu0 0.0
    %236 = vmatprep.subr.mxu0 0.0
    %237 = vmatpush2.msra.mxu0 0.0
    %238 = vmatprep.subr.mxu0 0.0
    %239 = vmatpush2.msra.mxu0 0.0
    %240 = vmatprep.subr.mxu0 0.0
    %241 = vmatpush2.msra.mxu0 0.0
    %242 = vmatprep.mubr.f32.mxu0 0.0
    %243 = vmatmul.mubr.f32.gmra.mxu0 %v176
    %v244 = vpop.f32.mrf.mxu0
    %v245 = vadd.f32 0.0, %v244
    %v246 = vpop.f32.mrf.mxu0
    %247 = vdwg.mxu0
    %v248 = vmul.f32 %v245, 0.125
    %s249 = scalar_lea.vmem [#allocation7], 1
    %v250 = vld [vmem:[%s249] sm:$0x1]
    %v252 = vlaneseq
    %v253 = vshrl.u32 %v252, 7
    %v254 = vsub.s32 0, %v253
    %v255 = vrot.slane %v250, %v254
    %v257 = vadd.f32 %v248, %v255
    %vm258 = vcmp.ge.f32.partialorder %v257, 0.0
    %v259 = vmul.f32 %v257, 0.2
    %v260 = vsel %vm258, %v257, %v259
    %s261 = scalar_lea.vmem [#allocation5], 128
    %v262 = vld [vmem:[%s261] sm:$0xff]
    %v263 = vld [vmem:[%s261 + $0x8] sm:$0xff]
    %v264 = vld [vmem:[%s261 + $0x10] sm:$0xff]
    %v265 = vld [vmem:[%s261 + $0x18] sm:$0xff]
    %v266 = vld [vmem:[%s261 + $0x20] sm:$0xff]
    %v267 = vld [vmem:[%s261 + $0x28] sm:$0xff]
    %v268 = vld [vmem:[%s261 + $0x30] sm:$0xff]
    %v269 = vld [vmem:[%s261 + $0x38] sm:$0xff]
    %v271 = vsel %vm80, %v260, 0
    %273 = vmatprep.subr.mxu0 0.0
    %274 = vmatpush1.msra.mxu0 0.0
    %275 = vmatprep.subr.mxu0 0.0
    %276 = vmatpush1.msra.mxu0 0.0
    %277 = vmatprep.subr.mxu0 0.0
    %278 = vmatpush1.msra.mxu0 0.0
    %279 = vmatprep.subr.mxu0 0.0
    %280 = vmatpush1.msra.mxu0 0.0
    %281 = vmatprep.subr.mxu0 0.0
    %282 = vmatpush1.msra.mxu0 0.0
    %283 = vmatprep.subr.mxu0 0.0
    %284 = vmatpush1.msra.mxu0 0.0
    %285 = vmatprep.subr.mxu0 0.0
    %286 = vmatpush1.msra.mxu0 0.0
    %287 = vmatprep.subr.mxu0 0.0
    %288 = vmatpush1.msra.mxu0 0.0
    %289 = vmatprep.subr.mxu0 0.0
    %290 = vmatpush1.msra.mxu0 %v269
    %291 = vmatprep.subr.mxu0 0.0
    %292 = vmatpush1.msra.mxu0 %v268
    %293 = vmatprep.subr.mxu0 0.0
    %294 = vmatpush1.msra.mxu0 %v267
    %295 = vmatprep.subr.mxu0 0.0
    %296 = vmatpush1.msra.mxu0 %v266
    %297 = vmatprep.subr.mxu0 0.0
    %298 = vmatpush1.msra.mxu0 %v265
    %299 = vmatprep.subr.mxu0 0.0
    %300 = vmatpush1.msra.mxu0 %v264
    %301 = vmatprep.subr.mxu0 0.0
    %302 = vmatpush1.msra.mxu0 %v263
    %303 = vmatprep.subr.mxu0 0.0
    %304 = vmatpush1.msra.mxu0 %v262
    %305 = vmatprep.subr.mxu0 0.0
    %306 = vmatpush2.msra.mxu0 0.0
    %307 = vmatprep.subr.mxu0 0.0
    %308 = vmatpush2.msra.mxu0 0.0
    %309 = vmatprep.subr.mxu0 0.0
    %310 = vmatpush2.msra.mxu0 0.0
    %311 = vmatprep.subr.mxu0 0.0
    %312 = vmatpush2.msra.mxu0 0.0
    %313 = vmatprep.subr.mxu0 0.0
    %314 = vmatpush2.msra.mxu0 0.0
    %315 = vmatprep.subr.mxu0 0.0
    %316 = vmatpush2.msra.mxu0 0.0
    %317 = vmatprep.subr.mxu0 0.0
    %318 = vmatpush2.msra.mxu0 0.0
    %319 = vmatprep.subr.mxu0 0.0
    %320 = vmatpush2.msra.mxu0 0.0
    %321 = vmatprep.subr.mxu0 0.0
    %322 = vmatpush2.msra.mxu0 0.0
    %323 = vmatprep.subr.mxu0 0.0
    %324 = vmatpush2.msra.mxu0 0.0
    %325 = vmatprep.subr.mxu0 0.0
    %326 = vmatpush2.msra.mxu0 0.0
    %327 = vmatprep.subr.mxu0 0.0
    %328 = vmatpush2.msra.mxu0 0.0
    %329 = vmatprep.subr.mxu0 0.0
    %330 = vmatpush2.msra.mxu0 0.0
    %331 = vmatprep.subr.mxu0 0.0
    %332 = vmatpush2.msra.mxu0 0.0
    %333 = vmatprep.subr.mxu0 0.0
    %334 = vmatpush2.msra.mxu0 0.0
    %335 = vmatprep.subr.mxu0 0.0
    %336 = vmatpush2.msra.mxu0 0.0
    %337 = vmatprep.mubr.f32.mxu0 0.0
    %338 = vmatmul.mubr.f32.gmra.mxu0 %v271
    %v339 = vpop.f32.mrf.mxu0
    %v340 = vadd.f32 0.0, %v339
    %v341 = vpop.f32.mrf.mxu0
    %342 = vdwg.mxu0
    %v343 = vmul.f32 %v340, 0.125
    %s344 = scalar_lea.vmem [#allocation7], 2
    %v345 = vld [vmem:[%s344] sm:$0x1]
    %v347 = vlaneseq
    %v348 = vshrl.u32 %v347, 7
    %v349 = vsub.s32 0, %v348
    %v350 = vrot.slane %v345, %v349
    %v352 = vadd.f32 %v343, %v350
    %vm353 = vcmp.ge.f32.partialorder %v352, 0.0
    %v354 = vmul.f32 %v352, 0.2
    %v355 = vsel %vm353, %v352, %v354
    %s356 = scalar_lea.vmem [#allocation5], 192
    %v357 = vld [vmem:[%s356] sm:$0xff]
    %v358 = vld [vmem:[%s356 + $0x8] sm:$0xff]
    %v359 = vld [vmem:[%s356 + $0x10] sm:$0xff]
    %v360 = vld [vmem:[%s356 + $0x18] sm:$0xff]
    %v361 = vld [vmem:[%s356 + $0x20] sm:$0xff]
    %v362 = vld [vmem:[%s356 + $0x28] sm:$0xff]
    %v363 = vld [vmem:[%s356 + $0x30] sm:$0xff]
    %v364 = vld [vmem:[%s356 + $0x38] sm:$0xff]
    %v366 = vsel %vm80, %v355, 0
    %368 = vmatprep.subr.mxu0 0.0
    %369 = vmatpush1.msra.mxu0 0.0
    %370 = vmatprep.subr.mxu0 0.0
    %371 = vmatpush1.msra.mxu0 0.0
    %372 = vmatprep.subr.mxu0 0.0
    %373 = vmatpush1.msra.mxu0 0.0
    %374 = vmatprep.subr.mxu0 0.0
    %375 = vmatpush1.msra.mxu0 0.0
    %376 = vmatprep.subr.mxu0 0.0
    %377 = vmatpush1.msra.mxu0 0.0
    %378 = vmatprep.subr.mxu0 0.0
    %379 = vmatpush1.msra.mxu0 0.0
    %380 = vmatprep.subr.mxu0 0.0
    %381 = vmatpush1.msra.mxu0 0.0
    %382 = vmatprep.subr.mxu0 0.0
    %383 = vmatpush1.msra.mxu0 0.0
    %384 = vmatprep.subr.mxu0 0.0
    %385 = vmatpush1.msra.mxu0 %v364
    %386 = vmatprep.subr.mxu0 0.0
    %387 = vmatpush1.msra.mxu0 %v363
    %388 = vmatprep.subr.mxu0 0.0
    %389 = vmatpush1.msra.mxu0 %v362
    %390 = vmatprep.subr.mxu0 0.0
    %391 = vmatpush1.msra.mxu0 %v361
    %392 = vmatprep.subr.mxu0 0.0
    %393 = vmatpush1.msra.mxu0 %v360
    %394 = vmatprep.subr.mxu0 0.0
    %395 = vmatpush1.msra.mxu0 %v359
    %396 = vmatprep.subr.mxu0 0.0
    %397 = vmatpush1.msra.mxu0 %v358
    %398 = vmatprep.subr.mxu0 0.0
    %399 = vmatpush1.msra.mxu0 %v357
    %400 = vmatprep.subr.mxu0 0.0
    %401 = vmatpush2.msra.mxu0 0.0
    %402 = vmatprep.subr.mxu0 0.0
    %403 = vmatpush2.msra.mxu0 0.0
    %404 = vmatprep.subr.mxu0 0.0
    %405 = vmatpush2.msra.mxu0 0.0
    %406 = vmatprep.subr.mxu0 0.0
    %407 = vmatpush2.msra.mxu0 0.0
    %408 = vmatprep.subr.mxu0 0.0
    %409 = vmatpush2.msra.mxu0 0.0
    %410 = vmatprep.subr.mxu0 0.0
    %411 = vmatpush2.msra.mxu0 0.0
    %412 = vmatprep.subr.mxu0 0.0
    %413 = vmatpush2.msra.mxu0 0.0
    %414 = vmatprep.subr.mxu0 0.0
    %415 = vmatpush2.msra.mxu0 0.0
    %416 = vmatprep.subr.mxu0 0.0
    %417 = vmatpush2.msra.mxu0 0.0
    %418 = vmatprep.subr.mxu0 0.0
    %419 = vmatpush2.msra.mxu0 0.0
    %420 = vmatprep.subr.mxu0 0.0
    %421 = vmatpush2.msra.mxu0 0.0
    %422 = vmatprep.subr.mxu0 0.0
    %423 = vmatpush2.msra.mxu0 0.0
    %424 = vmatprep.subr.mxu0 0.0
    %425 = vmatpush2.msra.mxu0 0.0
    %426 = vmatprep.subr.mxu0 0.0
    %427 = vmatpush2.msra.mxu0 0.0
    %428 = vmatprep.subr.mxu0 0.0
    %429 = vmatpush2.msra.mxu0 0.0
    %430 = vmatprep.subr.mxu0 0.0
    %431 = vmatpush2.msra.mxu0 0.0
    %432 = vmatprep.mubr.f32.mxu0 0.0
    %433 = vmatmul.mubr.f32.gmra.mxu0 %v366
    %v434 = vpop.f32.mrf.mxu0
    %v435 = vadd.f32 0.0, %v434
    %v436 = vpop.f32.mrf.mxu0
    %437 = vdwg.mxu0
    %v438 = vmul.f32 %v435, 0.125
    %s439 = scalar_lea.vmem [#allocation7], 3
    %v440 = vld [vmem:[%s439] sm:$0x1]
    %v442 = vlaneseq
    %v443 = vshrl.u32 %v442, 7
    %v444 = vsub.s32 0, %v443
    %v445 = vrot.slane %v440, %v444
    %v447 = vadd.f32 %v438, %v445
    %vm448 = vcmp.ge.f32.partialorder %v447, 0.0
    %v449 = vmul.f32 %v447, 0.2
    %v450 = vsel %vm448, %v447, %v449
    %s451 = scalar_lea.vmem [#allocation5], 256
    %v452 = vld [vmem:[%s451] sm:$0xff]
    %v453 = vld [vmem:[%s451 + $0x8] sm:$0xff]
    %v454 = vld [vmem:[%s451 + $0x10] sm:$0xff]
    %v455 = vld [vmem:[%s451 + $0x18] sm:$0xff]
    %v456 = vld [vmem:[%s451 + $0x20] sm:$0xff]
    %v457 = vld [vmem:[%s451 + $0x28] sm:$0xff]
    %v458 = vld [vmem:[%s451 + $0x30] sm:$0xff]
    %v459 = vld [vmem:[%s451 + $0x38] sm:$0xff]
    %v461 = vsel %vm80, %v450, 0
    %463 = vmatprep.subr.mxu0 0.0
    %464 = vmatpush1.msra.mxu0 0.0
    %465 = vmatprep.subr.mxu0 0.0
    %466 = vmatpush1.msra.mxu0 0.0
    %467 = vmatprep.subr.mxu0 0.0
    %468 = vmatpush1.msra.mxu0 0.0
    %469 = vmatprep.subr.mxu0 0.0
    %470 = vmatpush1.msra.mxu0 0.0
    %471 = vmatprep.subr.mxu0 0.0
    %472 = vmatpush1.msra.mxu0 0.0
    %473 = vmatprep.subr.mxu0 0.0
    %474 = vmatpush1.msra.mxu0 0.0
    %475 = vmatprep.subr.mxu0 0.0
    %476 = vmatpush1.msra.mxu0 0.0
    %477 = vmatprep.subr.mxu0 0.0
    %478 = vmatpush1.msra.mxu0 0.0
    %479 = vmatprep.subr.mxu0 0.0
    %480 = vmatpush1.msra.mxu0 %v459
    %481 = vmatprep.subr.mxu0 0.0
    %482 = vmatpush1.msra.mxu0 %v458
    %483 = vmatprep.subr.mxu0 0.0
    %484 = vmatpush1.msra.mxu0 %v457
    %485 = vmatprep.subr.mxu0 0.0
    %486 = vmatpush1.msra.mxu0 %v456
    %487 = vmatprep.subr.mxu0 0.0
    %488 = vmatpush1.msra.mxu0 %v455
    %489 = vmatprep.subr.mxu0 0.0
    %490 = vmatpush1.msra.mxu0 %v454
    %491 = vmatprep.subr.mxu0 0.0
    %492 = vmatpush1.msra.mxu0 %v453
    %493 = vmatprep.subr.mxu0 0.0
    %494 = vmatpush1.msra.mxu0 %v452
    %495 = vmatprep.subr.mxu0 0.0
    %496 = vmatpush2.msra.mxu0 0.0
    %497 = vmatprep.subr.mxu0 0.0
    %498 = vmatpush2.msra.mxu0 0.0
    %499 = vmatprep.subr.mxu0 0.0
    %500 = vmatpush2.msra.mxu0 0.0
    %501 = vmatprep.subr.mxu0 0.0
    %502 = vmatpush2.msra.mxu0 0.0
    %503 = vmatprep.subr.mxu0 0.0
    %504 = vmatpush2.msra.mxu0 0.0
    %505 = vmatprep.subr.mxu0 0.0
    %506 = vmatpush2.msra.mxu0 0.0
    %507 = vmatprep.subr.mxu0 0.0
    %508 = vmatpush2.msra.mxu0 0.0
    %509 = vmatprep.subr.mxu0 0.0
    %510 = vmatpush2.msra.mxu0 0.0
    %511 = vmatprep.subr.mxu0 0.0
    %512 = vmatpush2.msra.mxu0 0.0
    %513 = vmatprep.subr.mxu0 0.0
    %514 = vmatpush2.msra.mxu0 0.0
    %515 = vmatprep.subr.mxu0 0.0
    %516 = vmatpush2.msra.mxu0 0.0
    %517 = vmatprep.subr.mxu0 0.0
    %518 = vmatpush2.msra.mxu0 0.0
    %519 = vmatprep.subr.mxu0 0.0
    %520 = vmatpush2.msra.mxu0 0.0
    %521 = vmatprep.subr.mxu0 0.0
    %522 = vmatpush2.msra.mxu0 0.0
    %523 = vmatprep.subr.mxu0 0.0
    %524 = vmatpush2.msra.mxu0 0.0
    %525 = vmatprep.subr.mxu0 0.0
    %526 = vmatpush2.msra.mxu0 0.0
    %527 = vmatprep.mubr.f32.mxu0 0.0
    %528 = vmatmul.mubr.f32.gmra.mxu0 %v461
    %v529 = vpop.f32.mrf.mxu0
    %v530 = vadd.f32 0.0, %v529
    %v531 = vpop.f32.mrf.mxu0
    %532 = vdwg.mxu0
    %v533 = vmul.f32 %v530, 0.125
    %s534 = scalar_lea.vmem [#allocation7], 4
    %v535 = vld [vmem:[%s534] sm:$0x1]
    %v537 = vlaneseq
    %v538 = vshrl.u32 %v537, 7
    %v539 = vsub.s32 0, %v538
    %v540 = vrot.slane %v535, %v539
    %v542 = vadd.f32 %v533, %v540
    %vm543 = vcmp.ge.f32.partialorder %v542, 0.0
    %v544 = vmul.f32 %v542, 0.2
    %v545 = vsel %vm543, %v542, %v544
    %s546 = scalar_lea.vmem [#allocation5], 320
    %v547 = vld [vmem:[%s546] sm:$0xff]
    %v548 = vld [vmem:[%s546 + $0x8] sm:$0xff]
    %v549 = vld [vmem:[%s546 + $0x10] sm:$0xff]
    %v550 = vld [vmem:[%s546 + $0x18] sm:$0xff]
    %v551 = vld [vmem:[%s546 + $0x20] sm:$0xff]
    %v552 = vld [vmem:[%s546 + $0x28] sm:$0xff]
    %v553 = vld [vmem:[%s546 + $0x30] sm:$0xff]
    %v554 = vld [vmem:[%s546 + $0x38] sm:$0xff]
    %v556 = vsel %vm80, %v545, 0
    %558 = vmatprep.subr.mxu0 0.0
    %559 = vmatpush1.msra.mxu0 0.0
    %560 = vmatprep.subr.mxu0 0.0
    %561 = vmatpush1.msra.mxu0 0.0
    %562 = vmatprep.subr.mxu0 0.0
    %563 = vmatpush1.msra.mxu0 0.0
    %564 = vmatprep.subr.mxu0 0.0
    %565 = vmatpush1.msra.mxu0 0.0
    %566 = vmatprep.subr.mxu0 0.0
    %567 = vmatpush1.msra.mxu0 0.0
    %568 = vmatprep.subr.mxu0 0.0
    %569 = vmatpush1.msra.mxu0 0.0
    %570 = vmatprep.subr.mxu0 0.0
    %571 = vmatpush1.msra.mxu0 0.0
    %572 = vmatprep.subr.mxu0 0.0
    %573 = vmatpush1.msra.mxu0 0.0
    %574 = vmatprep.subr.mxu0 0.0
    %575 = vmatpush1.msra.mxu0 %v554
    %576 = vmatprep.subr.mxu0 0.0
    %577 = vmatpush1.msra.mxu0 %v553
    %578 = vmatprep.subr.mxu0 0.0
    %579 = vmatpush1.msra.mxu0 %v552
    %580 = vmatprep.subr.mxu0 0.0
    %581 = vmatpush1.msra.mxu0 %v551
    %582 = vmatprep.subr.mxu0 0.0
    %583 = vmatpush1.msra.mxu0 %v550
    %584 = vmatprep.subr.mxu0 0.0
    %585 = vmatpush1.msra.mxu0 %v549
    %586 = vmatprep.subr.mxu0 0.0
    %587 = vmatpush1.msra.mxu0 %v548
    %588 = vmatprep.subr.mxu0 0.0
    %589 = vmatpush1.msra.mxu0 %v547
    %590 = vmatprep.subr.mxu0 0.0
    %591 = vmatpush2.msra.mxu0 0.0
    %592 = vmatprep.subr.mxu0 0.0
    %593 = vmatpush2.msra.mxu0 0.0
    %594 = vmatprep.subr.mxu0 0.0
    %595 = vmatpush2.msra.mxu0 0.0
    %596 = vmatprep.subr.mxu0 0.0
    %597 = vmatpush2.msra.mxu0 0.0
    %598 = vmatprep.subr.mxu0 0.0
    %599 = vmatpush2.msra.mxu0 0.0
    %600 = vmatprep.subr.mxu0 0.0
    %601 = vmatpush2.msra.mxu0 0.0
    %602 = vmatprep.subr.mxu0 0.0
    %603 = vmatpush2.msra.mxu0 0.0
    %604 = vmatprep.subr.mxu0 0.0
    %605 = vmatpush2.msra.mxu0 0.0
    %606 = vmatprep.subr.mxu0 0.0
    %607 = vmatpush2.msra.mxu0 0.0
    %608 = vmatprep.subr.mxu0 0.0
    %609 = vmatpush2.msra.mxu0 0.0
    %610 = vmatprep.subr.mxu0 0.0
    %611 = vmatpush2.msra.mxu0 0.0
    %612 = vmatprep.subr.mxu0 0.0
    %613 = vmatpush2.msra.mxu0 0.0
    %614 = vmatprep.subr.mxu0 0.0
    %615 = vmatpush2.msra.mxu0 0.0
    %616 = vmatprep.subr.mxu0 0.0
    %617 = vmatpush2.msra.mxu0 0.0
    %618 = vmatprep.subr.mxu0 0.0
    %619 = vmatpush2.msra.mxu0 0.0
    %620 = vmatprep.subr.mxu0 0.0
    %621 = vmatpush2.msra.mxu0 0.0
    %622 = vmatprep.mubr.f32.mxu0 0.0
    %623 = vmatmul.mubr.f32.gmra.mxu0 %v556
    %v624 = vpop.f32.mrf.mxu0
    %v625 = vadd.f32 0.0, %v624
    %v626 = vpop.f32.mrf.mxu0
    %627 = vdwg.mxu0
    %v628 = vmul.f32 %v625, 0.125
    %s629 = scalar_lea.vmem [#allocation7], 5
    %v630 = vld [vmem:[%s629] sm:$0x1]
    %v632 = vlaneseq
    %v633 = vshrl.u32 %v632, 7
    %v634 = vsub.s32 0, %v633
    %v635 = vrot.slane %v630, %v634
    %v637 = vadd.f32 %v628, %v635
    %vm638 = vcmp.ge.f32.partialorder %v637, 0.0
    %v639 = vmul.f32 %v637, 0.2
    %v640 = vsel %vm638, %v637, %v639
    %s641 = scalar_lea.vmem [#allocation5], 384
    %v642 = vld [vmem:[%s641] sm:$0xff]
    %v643 = vld [vmem:[%s641 + $0x8] sm:$0xff]
    %v644 = vld [vmem:[%s641 + $0x10] sm:$0xff]
    %v645 = vld [vmem:[%s641 + $0x18] sm:$0xff]
    %v646 = vld [vmem:[%s641 + $0x20] sm:$0xff]
    %v647 = vld [vmem:[%s641 + $0x28] sm:$0xff]
    %v648 = vld [vmem:[%s641 + $0x30] sm:$0xff]
    %v649 = vld [vmem:[%s641 + $0x38] sm:$0xff]
    %v651 = vsel %vm80, %v640, 0
    %653 = vmatprep.subr.mxu0 0.0
    %654 = vmatpush1.msra.mxu0 0.0
    %655 = vmatprep.subr.mxu0 0.0
    %656 = vmatpush1.msra.mxu0 0.0
    %657 = vmatprep.subr.mxu0 0.0
    %658 = vmatpush1.msra.mxu0 0.0
    %659 = vmatprep.subr.mxu0 0.0
    %660 = vmatpush1.msra.mxu0 0.0
    %661 = vmatprep.subr.mxu0 0.0
    %662 = vmatpush1.msra.mxu0 0.0
    %663 = vmatprep.subr.mxu0 0.0
    %664 = vmatpush1.msra.mxu0 0.0
    %665 = vmatprep.subr.mxu0 0.0
    %666 = vmatpush1.msra.mxu0 0.0
    %667 = vmatprep.subr.mxu0 0.0
    %668 = vmatpush1.msra.mxu0 0.0
    %669 = vmatprep.subr.mxu0 0.0
    %670 = vmatpush1.msra.mxu0 %v649
    %671 = vmatprep.subr.mxu0 0.0
    %672 = vmatpush1.msra.mxu0 %v648
    %673 = vmatprep.subr.mxu0 0.0
    %674 = vmatpush1.msra.mxu0 %v647
    %675 = vmatprep.subr.mxu0 0.0
    %676 = vmatpush1.msra.mxu0 %v646
    %677 = vmatprep.subr.mxu0 0.0
    %678 = vmatpush1.msra.mxu0 %v645
    %679 = vmatprep.subr.mxu0 0.0
    %680 = vmatpush1.msra.mxu0 %v644
    %681 = vmatprep.subr.mxu0 0.0
    %682 = vmatpush1.msra.mxu0 %v643
    %683 = vmatprep.subr.mxu0 0.0
    %684 = vmatpush1.msra.mxu0 %v642
    %685 = vmatprep.subr.mxu0 0.0
    %686 = vmatpush2.msra.mxu0 0.0
    %687 = vmatprep.subr.mxu0 0.0
    %688 = vmatpush2.msra.mxu0 0.0
    %689 = vmatprep.subr.mxu0 0.0
    %690 = vmatpush2.msra.mxu0 0.0
    %691 = vmatprep.subr.mxu0 0.0
    %692 = vmatpush2.msra.mxu0 0.0
    %693 = vmatprep.subr.mxu0 0.0
    %694 = vmatpush2.msra.mxu0 0.0
    %695 = vmatprep.subr.mxu0 0.0
    %696 = vmatpush2.msra.mxu0 0.0
    %697 = vmatprep.subr.mxu0 0.0
    %698 = vmatpush2.msra.mxu0 0.0
    %699 = vmatprep.subr.mxu0 0.0
    %700 = vmatpush2.msra.mxu0 0.0
    %701 = vmatprep.subr.mxu0 0.0
    %702 = vmatpush2.msra.mxu0 0.0
    %703 = vmatprep.subr.mxu0 0.0
    %704 = vmatpush2.msra.mxu0 0.0
    %705 = vmatprep.subr.mxu0 0.0
    %706 = vmatpush2.msra.mxu0 0.0
    %707 = vmatprep.subr.mxu0 0.0
    %708 = vmatpush2.msra.mxu0 0.0
    %709 = vmatprep.subr.mxu0 0.0
    %710 = vmatpush2.msra.mxu0 0.0
    %711 = vmatprep.subr.mxu0 0.0
    %712 = vmatpush2.msra.mxu0 0.0
    %713 = vmatprep.subr.mxu0 0.0
    %714 = vmatpush2.msra.mxu0 0.0
    %715 = vmatprep.subr.mxu0 0.0
    %716 = vmatpush2.msra.mxu0 0.0
    %717 = vmatprep.mubr.f32.mxu0 0.0
    %718 = vmatmul.mubr.f32.gmra.mxu0 %v651
    %v719 = vpop.f32.mrf.mxu0
    %v720 = vadd.f32 0.0, %v719
    %v721 = vpop.f32.mrf.mxu0
    %722 = vdwg.mxu0
    %v723 = vmul.f32 %v720, 0.125
    %s724 = scalar_lea.vmem [#allocation7], 6
    %v725 = vld [vmem:[%s724] sm:$0x1]
    %v727 = vlaneseq
    %v728 = vshrl.u32 %v727, 7
    %v729 = vsub.s32 0, %v728
    %v730 = vrot.slane %v725, %v729
    %v732 = vadd.f32 %v723, %v730
    %vm733 = vcmp.ge.f32.partialorder %v732, 0.0
    %v734 = vmul.f32 %v732, 0.2
    %v735 = vsel %vm733, %v732, %v734
    %s736 = scalar_lea.vmem [#allocation5], 448
    %v737 = vld [vmem:[%s736] sm:$0xff]
    %v738 = vld [vmem:[%s736 + $0x8] sm:$0xff]
    %v739 = vld [vmem:[%s736 + $0x10] sm:$0xff]
    %v740 = vld [vmem:[%s736 + $0x18] sm:$0xff]
    %v741 = vld [vmem:[%s736 + $0x20] sm:$0xff]
    %v742 = vld [vmem:[%s736 + $0x28] sm:$0xff]
    %v743 = vld [vmem:[%s736 + $0x30] sm:$0xff]
    %v744 = vld [vmem:[%s736 + $0x38] sm:$0xff]
    %v746 = vsel %vm80, %v735, 0
    %748 = vmatprep.subr.mxu0 0.0
    %749 = vmatpush1.msra.mxu0 0.0
    %750 = vmatprep.subr.mxu0 0.0
    %751 = vmatpush1.msra.mxu0 0.0
    %752 = vmatprep.subr.mxu0 0.0
    %753 = vmatpush1.msra.mxu0 0.0
    %754 = vmatprep.subr.mxu0 0.0
    %755 = vmatpush1.msra.mxu0 0.0
    %756 = vmatprep.subr.mxu0 0.0
    %757 = vmatpush1.msra.mxu0 0.0
    %758 = vmatprep.subr.mxu0 0.0
    %759 = vmatpush1.msra.mxu0 0.0
    %760 = vmatprep.subr.mxu0 0.0
    %761 = vmatpush1.msra.mxu0 0.0
    %762 = vmatprep.subr.mxu0 0.0
    %763 = vmatpush1.msra.mxu0 0.0
    %764 = vmatprep.subr.mxu0 0.0
    %765 = vmatpush1.msra.mxu0 %v744
    %766 = vmatprep.subr.mxu0 0.0
    %767 = vmatpush1.msra.mxu0 %v743
    %768 = vmatprep.subr.mxu0 0.0
    %769 = vmatpush1.msra.mxu0 %v742
    %770 = vmatprep.subr.mxu0 0.0
    %771 = vmatpush1.msra.mxu0 %v741
    %772 = vmatprep.subr.mxu0 0.0
    %773 = vmatpush1.msra.mxu0 %v740
    %774 = vmatprep.subr.mxu0 0.0
    %775 = vmatpush1.msra.mxu0 %v739
    %776 = vmatprep.subr.mxu0 0.0
    %777 = vmatpush1.msra.mxu0 %v738
    %778 = vmatprep.subr.mxu0 0.0
    %779 = vmatpush1.msra.mxu0 %v737
    %780 = vmatprep.subr.mxu0 0.0
    %781 = vmatpush2.msra.mxu0 0.0
    %782 = vmatprep.subr.mxu0 0.0
    %783 = vmatpush2.msra.mxu0 0.0
    %784 = vmatprep.subr.mxu0 0.0
    %785 = vmatpush2.msra.mxu0 0.0
    %786 = vmatprep.subr.mxu0 0.0
    %787 = vmatpush2.msra.mxu0 0.0
    %788 = vmatprep.subr.mxu0 0.0
    %789 = vmatpush2.msra.mxu0 0.0
    %790 = vmatprep.subr.mxu0 0.0
    %791 = vmatpush2.msra.mxu0 0.0
    %792 = vmatprep.subr.mxu0 0.0
    %793 = vmatpush2.msra.mxu0 0.0
    %794 = vmatprep.subr.mxu0 0.0
    %795 = vmatpush2.msra.mxu0 0.0
    %796 = vmatprep.subr.mxu0 0.0
    %797 = vmatpush2.msra.mxu0 0.0
    %798 = vmatprep.subr.mxu0 0.0
    %799 = vmatpush2.msra.mxu0 0.0
    %800 = vmatprep.subr.mxu0 0.0
    %801 = vmatpush2.msra.mxu0 0.0
    %802 = vmatprep.subr.mxu0 0.0
    %803 = vmatpush2.msra.mxu0 0.0
    %804 = vmatprep.subr.mxu0 0.0
    %805 = vmatpush2.msra.mxu0 0.0
    %806 = vmatprep.subr.mxu0 0.0
    %807 = vmatpush2.msra.mxu0 0.0
    %808 = vmatprep.subr.mxu0 0.0
    %809 = vmatpush2.msra.mxu0 0.0
    %810 = vmatprep.subr.mxu0 0.0
    %811 = vmatpush2.msra.mxu0 0.0
    %812 = vmatprep.mubr.f32.mxu0 0.0
    %813 = vmatmul.mubr.f32.gmra.mxu0 %v746
    %v814 = vpop.f32.mrf.mxu0
    %v815 = vadd.f32 0.0, %v814
    %v816 = vpop.f32.mrf.mxu0
    %817 = vdwg.mxu0
    %v818 = vmul.f32 %v815, 0.125
    %s819 = scalar_lea.vmem [#allocation7], 7
    %v820 = vld [vmem:[%s819] sm:$0x1]
    %v822 = vlaneseq
    %v823 = vshrl.u32 %v822, 7
    %v824 = vsub.s32 0, %v823
    %v825 = vrot.slane %v820, %v824
    %v827 = vadd.f32 %v818, %v825
    %vm828 = vcmp.ge.f32.partialorder %v827, 0.0
    %v829 = vmul.f32 %v827, 0.2
    %v830 = vsel %vm828, %v827, %v829
    %831 = vst.msk [vmem:[#allocation8] sm:$0x3] %vm63, %v830
    %v832 = vsel %vm63, %v830, 0.0
    %v833 = vrot.slane %v832, 4
    %v834 = vadd.f32 %v832, %v833
    %v835 = vrot.slane %v834, 2
    %v836 = vadd.f32 %v834, %v835
    %v837 = vrot.slane %v836, 1
    %v838 = vadd.f32 %v836, %v837
    %v839 = vrcp.pop 2.0
    %v840 = vmul.f32 %v838, %v839
    %v841 = vld [vmem:[%s3] sm:$0x1]
    %v842 = vmul.f32 %v841, 0.995
    %v843 = vmul.f32 %v840, 0.005
    %v844 = vadd.f32 %v842, %v843
    %vm845 = vcmask 516096
    %846 = vst.msk [vmem:[#allocation11] sm:$0x1] %vm845, %v844
    %v847 = vmul.f32 %v830, 0.7
    %v848 = vmul.f32 %v844, 0.3
    %v850 = vlaneseq
    %v851 = vshrl.u32 %v850, 7
    %v852 = vsub.s32 0, %v851
    %v853 = vrot.slane %v848, %v852
    %v855 = vadd.f32 %v847, %v853
    %856 = vst.msk [vmem:[#allocation9] sm:$0x3] %vm63, %v855
    // Predicated region
    $region30: #{tpu_custom_call.1} parent=1 // pred_check
      _
    $region31: #{tpu_custom_call.1} parent=1 // pred_check_branch
      %858 = sbr.rel (0) target = $region33
    $region32: #{tpu_custom_call.1} parent=1 // pred_region
      %s860 = ssub.s32 32, 32
      %861 = vsyncadd [#allocation4], %s860
      %s863 = sshll.u32 [#allocation8], 4
      %s864 = int_to_ptr.vmem [resolvable:$true] %s863
      %866 = dma.vmem_to_hbm [thread:$0]  %s864, 32, %s4, [#allocation4]
    $region33: #{tpu_custom_call.1} parent=1 // pred_fallthru
      _
    // Predicated region
    $region34: #{tpu_custom_call.1} parent=1 // pred_check
      _
    $region35: #{tpu_custom_call.1} parent=1 // pred_check_branch
      %868 = sbr.rel (0) target = $region37
    $region36: #{tpu_custom_call.1} parent=1 // pred_region
      %s870 = ssub.s32 32, 32
      %871 = vsyncadd [#allocation10], %s870
      %s873 = sshll.u32 [#allocation9], 4
      %s874 = int_to_ptr.vmem [resolvable:$true] %s873
      %876 = dma.vmem_to_hbm [thread:$0]  %s874, 32, %s5, [#allocation10]
    $region37: #{tpu_custom_call.1} parent=1 // pred_fallthru
      _
    // Predicated region
    $region38: #{tpu_custom_call.1} parent=1 // pred_check
      _
    $region39: #{tpu_custom_call.1} parent=1 // pred_check_branch
      %878 = sbr.rel (0) target = $region41
    $region40: #{tpu_custom_call.1} parent=1 // pred_region
      %s880 = ssub.s32 16, 16
      %881 = vsyncadd [#allocation10], %s880
      %s883 = sshll.u32 [#allocation11], 4
      %s884 = int_to_ptr.vmem [resolvable:$true] %s883
      %886 = dma.vmem_to_hbm [thread:$0]  %s884, 16, %s6, [#allocation10]
    $region41: #{tpu_custom_call.1} parent=1 // pred_fallthru
      _
    // Predicated region
    $region42: #{tpu_custom_call.1} parent=1 // pred_check
      _
    $region43: #{tpu_custom_call.1} parent=1 // pred_check_branch
      %888 = sbr.rel (0) target = $region45
    $region44: #{tpu_custom_call.1} parent=1 // pred_region
      %889 = dma.done [#allocation4], 32
    $region45: #{tpu_custom_call.1} parent=1 // pred_fallthru
      _
    // Predicated region
    $region46: #{tpu_custom_call.1} parent=1 // pred_check
      _
    $region47: #{tpu_custom_call.1} parent=1 // pred_check_branch
      %891 = sbr.rel (0) target = $region49
    $region48: #{tpu_custom_call.1} parent=1 // pred_region
      %892 = dma.done [#allocation10], 32
    $region49: #{tpu_custom_call.1} parent=1 // pred_fallthru
      _
    // Predicated region
    $region50: #{tpu_custom_call.1} parent=1 // pred_check
      _
    $region51: #{tpu_custom_call.1} parent=1 // pred_check_branch
      %894 = sbr.rel (0) target = $region53
    $region52: #{tpu_custom_call.1} parent=1 // pred_region
      %895 = dma.done [#allocation10], 16
    $region53: #{tpu_custom_call.1} parent=1 // pred_fallthru
      _
    %896 = vsyncpa [#allocation3], 1
    %897 = vsyncpa [#allocation6], 1
    %898 = vsyncpa [#allocation4], 1
    %899 = vsyncpa [#allocation10], 1

</llo_original>
